<compile_context>
chip_gen: v7x
topology: tpu7x:2x2x1
jax: 0.10.0
libtpu: 0.0.40
codegen_flags: <defaults>
</compile_context>

<pallas_src>
import functools

import jax
import jax.numpy as jnp
from jax.experimental import pallas as pl
from jax.experimental.pallas import tpu as pltpu


_DEFAULT_BLOCK_B = 1024  # rows of x per grid step (multiple of 8 and 128)


def mlp_head_kernel(x_ref, w1_ref, w2_ref, w3_ref, b_ref, o_ref):
    # Packed biases: (1, 128) = [ b1(64) | b2(32) | b3(1) | zero pad(31) ]
    b = b_ref[...]
    b1 = b[:, 0:64]
    b2 = b[:, 64:96]
    b3 = b[:, 96:97]

    # fc1 + relu : [tb,128]@[128,64] on the MXU, bf16 operands, f32 accum.
    x = x_ref[...].astype(jnp.bfloat16)
    h1 = jnp.dot(x, w1_ref[...], preferred_element_type=jnp.float32) + b1
    h1 = jnp.maximum(h1, 0.0)

    # fc2 + relu : [tb,64]@[64,32] on the MXU, bf16 operands, f32 accum.
    h2 = jnp.dot(h1.astype(jnp.bfloat16), w2_ref[...],
                 preferred_element_type=jnp.float32) + b2
    h2 = jnp.maximum(h2, 0.0)

    # fc3 + sigmoid : N=1, so keep it off the MXU — VPU multiply by the
    # (1,32) weight row, cross-lane reduce on the XLU, sigmoid on the EUP.
    logits = jnp.sum(h2 * w3_ref[...], axis=-1, keepdims=True) + b3  # (tb, 1)
    o_ref[...] = jax.nn.sigmoid(logits).astype(o_ref.dtype)


@functools.partial(jax.jit, static_argnames=("block_b",))
def head_128_forward(x, w1, b1, w2, b2, w3, b3, *, block_b=None):
    """y = sigmoid(relu(relu(x@W1+b1)@W2+b2)@W3+b3), x: [B,128] f32."""
    B, D = x.shape
    assert D == 128
    tb = _DEFAULT_BLOCK_B if block_b is None else block_b
    tb = min(tb, B)
    grid = (pl.cdiv(B, tb),)

    # bf16 MXU operands (tiny arrays, cast once inside the jit).
    w1b = w1.astype(jnp.bfloat16)
    w2b = w2.astype(jnp.bfloat16)
    # fc3 weight as an f32 row for the VPU/XLU path.
    w3r = w3.reshape(1, 32).astype(jnp.float32)
    # Pack the three biases into a single lane-aligned (1, 128) buffer.
    b_packed = jnp.concatenate(
        [b1.reshape(1, 64).astype(jnp.float32),
         b2.reshape(1, 32).astype(jnp.float32),
         b3.reshape(1, 1).astype(jnp.float32),
         jnp.zeros((1, 31), jnp.float32)],
        axis=1)

    const = lambda shape: pl.BlockSpec(shape, lambda i: (0, 0))

    return pl.pallas_call(
        mlp_head_kernel,
        out_shape=jax.ShapeDtypeStruct((B, 1), jnp.float32),
        grid_spec=pltpu.PrefetchScalarGridSpec(
            num_scalar_prefetch=0,
            grid=grid,
            in_specs=[
                pl.BlockSpec((tb, 128), lambda i: (i, 0)),  # x batch tile
                const((128, 64)),                           # W1 (bf16, resident)
                const((64, 32)),                            # W2 (bf16, resident)
                const((1, 32)),                             # w3 row (f32)
                const((1, 128)),                            # packed biases (f32)
            ],
            out_specs=pl.BlockSpec((tb, 1), lambda i: (i, 0)),
        ),
        compiler_params=pltpu.CompilerParams(
            dimension_semantics=("parallel",)),
    )(x, w1b, w2b, w3r, b_packed)


def init_params(key):
    """Deterministic init matching nn.Linear shapes (stored as [in, out])."""
    ks = jax.random.split(key, 6)

    def linear(kw, kb, fan_in, fan_out):
        bound = 1.0 / jnp.sqrt(fan_in)
        w = jax.random.uniform(kw, (fan_in, fan_out), jnp.float32,
                               -bound, bound)
        b = jax.random.uniform(kb, (1, fan_out), jnp.float32, -bound, bound)
        return w, b

    w1, b1 = linear(ks[0], ks[1], 128, 64)
    w2, b2 = linear(ks[2], ks[3], 64, 32)
    w3, b3 = linear(ks[4], ks[5], 32, 1)
    return w1, b1, w2, b2, w3, b3


def reference(x, w1, b1, w2, b2, w3, b3):
    """Pure-JAX reference matching the kernel's bf16-operand numerics."""
    h = jnp.dot(x.astype(jnp.bfloat16), w1.astype(jnp.bfloat16),
                preferred_element_type=jnp.float32) + b1
    h = jnp.maximum(h, 0.0)
    h = jnp.dot(h.astype(jnp.bfloat16), w2.astype(jnp.bfloat16),
                preferred_element_type=jnp.float32) + b2
    h = jnp.maximum(h, 0.0)
    return jax.nn.sigmoid(h @ w3 + b3)


if __name__ == "__main__":
    key = jax.random.PRNGKey(0)
    kx, kp = jax.random.split(key)
    params = init_params(kp)

    # Cases: single tile (default block), multi-tile, ragged last tile.
    for B, blk in ((8, None), (256, 128), (200, 128)):
        x = jax.random.normal(jax.random.fold_in(kx, B), (B, 128),
                              dtype=jnp.float32)
        out = head_128_forward(x, *params, block_b=blk)
        out = jax.block_until_ready(out)
        ref = reference(x, *params)
        assert out.shape == (B, 1)
        assert bool(jnp.all(jnp.isfinite(out)))
        max_err = float(jnp.max(jnp.abs(out - ref)))
        assert jnp.allclose(out, ref, atol=5e-3, rtol=0.0), max_err

    print("KERNEL_OK")
</pallas_src>

<mosaic_0001>
module attributes {stable_mosaic.version = 11 : i64} {
  func.func @mlp_head_kernel(%arg0: i32, %arg1: memref<8x128xf32, #tpu.memory_space<vmem>>, %arg2: memref<128x64xbf16, #tpu.memory_space<vmem>>, %arg3: memref<64x32xbf16, #tpu.memory_space<vmem>>, %arg4: memref<1x32xf32, #tpu.memory_space<vmem>>, %arg5: memref<1x128xf32, #tpu.memory_space<vmem>>, %arg6: memref<8x1xf32, #tpu.memory_space<vmem>>) attributes {dimension_semantics = [#tpu.dimension_semantics<parallel>], iteration_bounds = array<i64: 1>, scalar_prefetch = 0 : i64, scratch_operands = 0 : i64, tpu.core_type = #tpu.core_type<tc>, window_params = [{transform_indices = @transform_0, window_bounds = array<i64: 8, 128>}, {pipeline_mode = #tpu.pipeline_mode<synchronous>, transform_indices = @transform_1, window_bounds = array<i64: 128, 64>}, {pipeline_mode = #tpu.pipeline_mode<synchronous>, transform_indices = @transform_2, window_bounds = array<i64: 64, 32>}, {pipeline_mode = #tpu.pipeline_mode<synchronous>, transform_indices = @transform_3, window_bounds = array<i64: 1, 32>}, {pipeline_mode = #tpu.pipeline_mode<synchronous>, transform_indices = @transform_4, window_bounds = array<i64: 1, 128>}, {transform_indices = @transform_5, window_bounds = array<i64: 8, 1>}]} {
    %c0 = arith.constant 0 : index
    %c0_0 = arith.constant 0 : index
    %0 = vector.load %arg5[%c0, %c0_0] : memref<1x128xf32, #tpu.memory_space<vmem>>, vector<1x128xf32>
    %1 = vector.extract_strided_slice %0 {offsets = [0, 0], sizes = [1, 64], strides = [1, 1]} : vector<1x128xf32> to vector<1x64xf32>
    %2 = vector.extract_strided_slice %0 {offsets = [0, 64], sizes = [1, 32], strides = [1, 1]} : vector<1x128xf32> to vector<1x32xf32>
    %3 = vector.extract_strided_slice %0 {offsets = [0, 96], sizes = [1, 1], strides = [1, 1]} : vector<1x128xf32> to vector<1x1xf32>
    %c0_1 = arith.constant 0 : index
    %c0_2 = arith.constant 0 : index
    %4 = vector.load %arg1[%c0_1, %c0_2] : memref<8x128xf32, #tpu.memory_space<vmem>>, vector<8x128xf32>
    %5 = arith.truncf %4 : vector<8x128xf32> to vector<8x128xbf16>
    %c0_3 = arith.constant 0 : index
    %c0_4 = arith.constant 0 : index
    %6 = vector.load %arg2[%c0_3, %c0_4] : memref<128x64xbf16, #tpu.memory_space<vmem>>, vector<128x64xbf16>
    %cst = arith.constant dense<0.000000e+00> : vector<8x64xf32>
    %7 = tpu.matmul %5, %6, %cst {dimension_numbers = #tpu.dot_dimension_numbers<[1], [0], [0], [1], [0, 0, 1, 1], [], []>} : vector<8x128xbf16>, vector<128x64xbf16>, vector<8x64xf32> -> vector<8x64xf32>
    %8 = vector.broadcast %1 : vector<1x64xf32> to vector<8x64xf32>
    %9 = arith.addf %7, %8 : vector<8x64xf32>
    %cst_5 = arith.constant 0.000000e+00 : f32
    %10 = vector.broadcast %cst_5 : f32 to vector<8x64xf32>
    %11 = arith.maximumf %9, %10 : vector<8x64xf32>
    %12 = arith.truncf %11 : vector<8x64xf32> to vector<8x64xbf16>
    %c0_6 = arith.constant 0 : index
    %c0_7 = arith.constant 0 : index
    %13 = vector.load %arg3[%c0_6, %c0_7] : memref<64x32xbf16, #tpu.memory_space<vmem>>, vector<64x32xbf16>
    %cst_8 = arith.constant dense<0.000000e+00> : vector<8x32xf32>
    %14 = tpu.matmul %12, %13, %cst_8 {dimension_numbers = #tpu.dot_dimension_numbers<[1], [0], [0], [1], [0, 0, 1, 1], [], []>} : vector<8x64xbf16>, vector<64x32xbf16>, vector<8x32xf32> -> vector<8x32xf32>
    %15 = vector.broadcast %2 : vector<1x32xf32> to vector<8x32xf32>
    %16 = arith.addf %14, %15 : vector<8x32xf32>
    %cst_9 = arith.constant 0.000000e+00 : f32
    %17 = vector.broadcast %cst_9 : f32 to vector<8x32xf32>
    %18 = arith.maximumf %16, %17 : vector<8x32xf32>
    %c0_10 = arith.constant 0 : index
    %c0_11 = arith.constant 0 : index
    %19 = vector.load %arg4[%c0_10, %c0_11] : memref<1x32xf32, #tpu.memory_space<vmem>>, vector<1x32xf32>
    %20 = vector.broadcast %19 : vector<1x32xf32> to vector<8x32xf32>
    %21 = arith.mulf %18, %20 : vector<8x32xf32>
    %cst_12 = arith.constant dense<0.000000e+00> : vector<8xf32>
    %22 = vector.multi_reduction <add>, %21, %cst_12 [1] : vector<8x32xf32> to vector<8xf32>
    %23 = vector.shape_cast %22 : vector<8xf32> to vector<8x1xf32>
    %24 = vector.broadcast %3 : vector<1x1xf32> to vector<8x1xf32>
    %25 = arith.addf %23, %24 : vector<8x1xf32>
    %26 = arith.negf %25 : vector<8x1xf32>
    %27 = math.exp %26 : vector<8x1xf32>
    %cst_13 = arith.constant 1.000000e+00 : f32
    %28 = vector.broadcast %cst_13 : f32 to vector<8x1xf32>
    %29 = arith.addf %28, %27 : vector<8x1xf32>
    %30 = arith.divf %28, %29 : vector<8x1xf32>
    %c0_14 = arith.constant 0 : index
    %c0_15 = arith.constant 0 : index
    %31 = vector.load %arg6[%c0_14, %c0_15] : memref<8x1xf32, #tpu.memory_space<vmem>>, vector<8x1xf32>
    tpu.vector_store %arg6[%c0_14, %c0_15], %30 {strides = array<i32>} : memref<8x1xf32, #tpu.memory_space<vmem>>, vector<8x1xf32>,
    return
  }
  func.func @transform_0(%arg0: i32) -> (i32, i32) {
    %c0_i32 = arith.constant 0 : i32
    %c0_i32_0 = arith.constant 0 : i32
    return %arg0, %c0_i32 : i32, i32
  }
  func.func @transform_1(%arg0: i32) -> (i32, i32) {
    %c0_i32 = arith.constant 0 : i32
    %c0_i32_0 = arith.constant 0 : i32
    %c0_i32_1 = arith.constant 0 : i32
    return %c0_i32, %c0_i32_0 : i32, i32
  }
  func.func @transform_2(%arg0: i32) -> (i32, i32) {
    %c0_i32 = arith.constant 0 : i32
    %c0_i32_0 = arith.constant 0 : i32
    %c0_i32_1 = arith.constant 0 : i32
    return %c0_i32, %c0_i32_0 : i32, i32
  }
  func.func @transform_3(%arg0: i32) -> (i32, i32) {
    %c0_i32 = arith.constant 0 : i32
    %c0_i32_0 = arith.constant 0 : i32
    %c0_i32_1 = arith.constant 0 : i32
    return %c0_i32, %c0_i32_0 : i32, i32
  }
  func.func @transform_4(%arg0: i32) -> (i32, i32) {
    %c0_i32 = arith.constant 0 : i32
    %c0_i32_0 = arith.constant 0 : i32
    %c0_i32_1 = arith.constant 0 : i32
    return %c0_i32, %c0_i32_0 : i32, i32
  }
  func.func @transform_5(%arg0: i32) -> (i32, i32) {
    %c0_i32 = arith.constant 0 : i32
    %c0_i32_0 = arith.constant 0 : i32
    return %arg0, %c0_i32 : i32, i32
  }
}

</mosaic_0001>

<llo_original>
// kernel: head_128_forward.1
$region0: #{head_128_forward.1}
  #allocation0 [shape = 'u32[]', space=smem, size = 0x4, offset = 0x4, fixed_abs, tag = 'smem constant byte address 0x4 - core index']
  #allocation1 [shape = 'u32[144,128]{1,0:T(1,128)}', space=vmem, size = 0x12000, scoped, tag = 'internal scratch']
  %s0 = inlined_call_operand.vmem [shape: f32[8,128], index: 0, kind: input, shape index: {}]
  %s1 = inlined_call_operand.vmem [shape: bf16[128,64], index: 1, kind: input, shape index: {}]
  %s2 = inlined_call_operand.vmem [shape: bf16[64,32], index: 2, kind: input, shape index: {}]
  %s3 = inlined_call_operand.vmem [shape: f32[1,32], index: 3, kind: input, shape index: {}]
  %s4 = inlined_call_operand.vmem [shape: f32[1,128], index: 4, kind: input, shape index: {}]
  %s5 = inlined_call_operand.vmem [shape: f32[8,1], index: 5, kind: output, shape index: {}]
  %s6 = sld [smem:[#allocation0]]
  $region30: #{head_128_forward.1} parent=0
    _
  %s8 = ssub.s32 1, %s6
  %s9 = scalar_select 0, %s8, %s6
  // Predicated region
  $region2: #{head_128_forward.1} parent=0 // pred_check
    _
  $region3: #{head_128_forward.1} parent=0 // pred_check_branch
    %11 = sbr.rel (0) target = $region5
  $region4: #{head_128_forward.1} parent=0 // pred_region
    _
  $region5: #{head_128_forward.1} parent=0 // pred_fallthru
    _
  // Predicated region
  $region6: #{head_128_forward.1} parent=0 // pred_check
    _
  $region7: #{head_128_forward.1} parent=0 // pred_check_branch
    %13 = sbr.rel (0) target = $region9
  $region8: #{head_128_forward.1} parent=0 // pred_region
    _
  $region9: #{head_128_forward.1} parent=0 // pred_fallthru
    _
  // Predicated region
  $region10: #{head_128_forward.1} parent=0 // pred_check
    _
  $region11: #{head_128_forward.1} parent=0 // pred_check_branch
    %15 = sbr.rel (0) target = $region13
  $region12: #{head_128_forward.1} parent=0 // pred_region
    _
  $region13: #{head_128_forward.1} parent=0 // pred_fallthru
    _
  // Predicated region
  $region14: #{head_128_forward.1} parent=0 // pred_check
    _
  $region15: #{head_128_forward.1} parent=0 // pred_check_branch
    %17 = sbr.rel (0) target = $region17
  $region16: #{head_128_forward.1} parent=0 // pred_region
    _
  $region17: #{head_128_forward.1} parent=0 // pred_fallthru
    _
  // Predicated region
  $region18: #{head_128_forward.1} parent=0 // pred_check
    _
  $region19: #{head_128_forward.1} parent=0 // pred_check_branch
    %19 = sbr.rel (0) target = $region21
  $region20: #{head_128_forward.1} parent=0 // pred_region
    _
  $region21: #{head_128_forward.1} parent=0 // pred_fallthru
    _
  %v21 = vld [vmem:[%s4] sm:$0x1]
  %v22 = vld [vmem:[%s0] sm:$0xff]
  %v23 = vpack.c.bf16 %v22, %v22
  %v24 = vld [vmem:[%s1] sm:$0xf]
  %v25 = vld [vmem:[%s1 + $0x4] sm:$0xf]
  %v26 = vld [vmem:[%s1 + $0x8] sm:$0xf]
  %v27 = vld [vmem:[%s1 + $0xc] sm:$0xf]
  %v28 = vld [vmem:[%s1 + $0x10] sm:$0xf]
  %v29 = vld [vmem:[%s1 + $0x14] sm:$0xf]
  %v30 = vld [vmem:[%s1 + $0x18] sm:$0xf]
  %v31 = vld [vmem:[%s1 + $0x1c] sm:$0xf]
  %v32 = vld [vmem:[%s1 + $0x20] sm:$0xf]
  %v33 = vld [vmem:[%s1 + $0x24] sm:$0xf]
  %v34 = vld [vmem:[%s1 + $0x28] sm:$0xf]
  %v35 = vld [vmem:[%s1 + $0x2c] sm:$0xf]
  %v36 = vld [vmem:[%s1 + $0x30] sm:$0xf]
  %v37 = vld [vmem:[%s1 + $0x34] sm:$0xf]
  %v38 = vld [vmem:[%s1 + $0x38] sm:$0xf]
  %v39 = vld [vmem:[%s1 + $0x3c] sm:$0xf]
  %v41 = vlaneseq
  %v42 = vshrl.u32 %v41, 7
  %v43 = vsub.s32 0, %v42
  %v44 = vrot.slane %v21, %v43
  %v62 = vunpack.c.l.b16 %v24
  %v63 = vunpack.c.l.b16 %v25
  %v64 = vunpack.c.l.b16 %v26
  %v65 = vunpack.c.l.b16 %v27
  %v66 = vunpack.c.l.b16 %v28
  %v67 = vunpack.c.l.b16 %v29
  %v68 = vunpack.c.l.b16 %v30
  %v69 = vunpack.c.l.b16 %v31
  %v70 = vunpack.c.l.b16 %v32
  %v71 = vunpack.c.l.b16 %v33
  %v72 = vunpack.c.l.b16 %v34
  %v73 = vunpack.c.l.b16 %v35
  %v74 = vunpack.c.l.b16 %v36
  %v75 = vunpack.c.l.b16 %v37
  %v76 = vunpack.c.l.b16 %v38
  %v77 = vunpack.c.l.b16 %v39
  %v78 = vpack.c.b16 %v63, %v62
  %v79 = vpack.c.b16 %v65, %v64
  %v80 = vpack.c.b16 %v67, %v66
  %v81 = vpack.c.b16 %v69, %v68
  %v82 = vpack.c.b16 %v71, %v70
  %v83 = vpack.c.b16 %v73, %v72
  %v84 = vpack.c.b16 %v75, %v74
  %v85 = vpack.c.b16 %v77, %v76
  %94 = vmatprep.subr.bf16.mxu0 0
  %95 = vmatpush1.bf16.msra.mxu0 %v78
  %96 = vmatprep.subr.bf16.mxu0 0
  %97 = vmatpush1.bf16.msra.mxu0 %v79
  %98 = vmatprep.subr.bf16.mxu0 0
  %99 = vmatpush1.bf16.msra.mxu0 %v80
  %100 = vmatprep.subr.bf16.mxu0 0
  %101 = vmatpush1.bf16.msra.mxu0 %v81
  %102 = vmatprep.subr.bf16.mxu0 0
  %103 = vmatpush1.bf16.msra.mxu0 %v82
  %104 = vmatprep.subr.bf16.mxu0 0
  %105 = vmatpush1.bf16.msra.mxu0 %v83
  %106 = vmatprep.subr.bf16.mxu0 0
  %107 = vmatpush1.bf16.msra.mxu0 %v84
  %108 = vmatprep.subr.bf16.mxu0 0
  %109 = vmatpush1.bf16.msra.mxu0 %v85
  %110 = vmatprep.subr.bf16.mxu0 0
  %111 = vmatpush1.bf16.msra.mxu0 0
  %112 = vmatprep.subr.bf16.mxu0 0
  %113 = vmatpush1.bf16.msra.mxu0 0
  %114 = vmatprep.subr.bf16.mxu0 0
  %115 = vmatpush1.bf16.msra.mxu0 0
  %116 = vmatprep.subr.bf16.mxu0 0
  %117 = vmatpush1.bf16.msra.mxu0 0
  %118 = vmatprep.subr.bf16.mxu0 0
  %119 = vmatpush1.bf16.msra.mxu0 0
  %120 = vmatprep.subr.bf16.mxu0 0
  %121 = vmatpush1.bf16.msra.mxu0 0
  %122 = vmatprep.subr.bf16.mxu0 0
  %123 = vmatpush1.bf16.msra.mxu0 0
  %124 = vmatprep.subr.bf16.mxu0 0
  %125 = vmatpush1.bf16.msra.mxu0 0
  %126 = vmatprep.mubr.bf16.mxu0 0
  %127 = vmatmul.mubr.bf16.gmra.mrb[0].mxu0 %v23
  %v128 = vpop.f32.mrb[0].mxu0
  %v129 = vadd.f32 %v44, %v128
  %v130 = vpop.f32.mrb[0].mxu0
  %v131 = vpop.f32.mrb[0].mxu0
  %v132 = vpop.f32.mrb[0].mxu0
  %133 = vdwg.mxu0
  %v134 = vmax.f32 %v129, 0.0
  %v135 = vpack.c.bf16 %v134, %v134
  %v136 = vld [vmem:[%s2] sm:$0xf]
  %v137 = vld [vmem:[%s2 + $0x4] sm:$0xf]
  %v138 = vld [vmem:[%s2 + $0x8] sm:$0xf]
  %v139 = vld [vmem:[%s2 + $0xc] sm:$0xf]
  %v140 = vld [vmem:[%s2 + $0x10] sm:$0xf]
  %v141 = vld [vmem:[%s2 + $0x14] sm:$0xf]
  %v142 = vld [vmem:[%s2 + $0x18] sm:$0xf]
  %v143 = vld [vmem:[%s2 + $0x1c] sm:$0xf]
  %v152 = vunpack.c.l.b16 %v136
  %v153 = vunpack.c.l.b16 %v137
  %v154 = vunpack.c.l.b16 %v138
  %v155 = vunpack.c.l.b16 %v139
  %v156 = vunpack.c.l.b16 %v140
  %v157 = vunpack.c.l.b16 %v141
  %v158 = vunpack.c.l.b16 %v142
  %v159 = vunpack.c.l.b16 %v143
  %v160 = vpack.c.b16 %v153, %v152
  %v161 = vpack.c.b16 %v155, %v154
  %v162 = vpack.c.b16 %v157, %v156
  %v163 = vpack.c.b16 %v159, %v158
  %168 = vrot.lane.b32.xlu0 %v44, 64
  %v169 = vpop.permute.xlu0 %168
  %vm171 = vcmask 523264
  %v173 = vsel %vm171, %v135, 0
  %175 = vmatprep.subr.bf16.mxu0 0
  %176 = vmatpush1.bf16.msra.mxu0 %v160
  %177 = vmatprep.subr.bf16.mxu0 0
  %178 = vmatpush1.bf16.msra.mxu0 %v161
  %179 = vmatprep.subr.bf16.mxu0 0
  %180 = vmatpush1.bf16.msra.mxu0 %v162
  %181 = vmatprep.subr.bf16.mxu0 0
  %182 = vmatpush1.bf16.msra.mxu0 %v163
  %183 = vmatprep.subr.bf16.mxu0 0
  %184 = vmatpush1.bf16.msra.mxu0 0
  %185 = vmatprep.subr.bf16.mxu0 0
  %186 = vmatpush1.bf16.msra.mxu0 0
  %187 = vmatprep.subr.bf16.mxu0 0
  %188 = vmatpush1.bf16.msra.mxu0 0
  %189 = vmatprep.subr.bf16.mxu0 0
  %190 = vmatpush1.bf16.msra.mxu0 0
  %191 = vmatprep.subr.bf16.mxu0 0
  %192 = vmatpush1.bf16.msra.mxu0 0
  %193 = vmatprep.subr.bf16.mxu0 0
  %194 = vmatpush1.bf16.msra.mxu0 0
  %195 = vmatprep.subr.bf16.mxu0 0
  %196 = vmatpush1.bf16.msra.mxu0 0
  %197 = vmatprep.subr.bf16.mxu0 0
  %198 = vmatpush1.bf16.msra.mxu0 0
  %199 = vmatprep.subr.bf16.mxu0 0
  %200 = vmatpush1.bf16.msra.mxu0 0
  %201 = vmatprep.subr.bf16.mxu0 0
  %202 = vmatpush1.bf16.msra.mxu0 0
  %203 = vmatprep.subr.bf16.mxu0 0
  %204 = vmatpush1.bf16.msra.mxu0 0
  %205 = vmatprep.subr.bf16.mxu0 0
  %206 = vmatpush1.bf16.msra.mxu0 0
  %207 = vmatprep.mubr.bf16.mxu0 0
  %208 = vmatmul.mubr.bf16.gmra.mrb[0].mxu0 %v173
  %v209 = vpop.f32.mrb[0].mxu0
  %v210 = vadd.f32 %v169, %v209
  %v211 = vpop.f32.mrb[0].mxu0
  %v212 = vpop.f32.mrb[0].mxu0
  %v213 = vpop.f32.mrb[0].mxu0
  %214 = vdwg.mxu0
  %v215 = vmax.f32 %v210, 0.0
  %v216 = vld [vmem:[%s3] sm:$0x1]
  %v218 = vlaneseq
  %v219 = vshrl.u32 %v218, 7
  %v220 = vsub.s32 0, %v219
  %v221 = vrot.slane %v216, %v220
  %v223 = vmul.f32 %v215, %v221
  %vm224 = vcmask 261120
  %v225 = vsel %vm224, %v223, 0.0
  %226 = vadd.xlane.f32.xlu0 %v225
  %v227 = vpop.xlane.xlu0 %226
  %v228 = vadd.f32 %v227, %v44
  %v229 = vxor.u32 %v228, 2147483648
  %v230 = vmul.f32 %v229, 1.442695
  %v231 = vpow.pop %v230
  %v232 = vadd.f32 %v231, 1.0
  %v233 = vrcp.pop %v232
  %v234 = vmul.f32 1.0, %v233
  %236 = vrot.lane.b32.xlu0 %v234, 32
  %v237 = vpop.permute.xlu0 %236
  %vm239 = vcmask 7168
  %240 = vst.msk [vmem:[%s5] sm:$0xff] %vm239, %v237
  // Predicated region
  $region22: #{head_128_forward.1} parent=0 // pred_check
    _
  $region23: #{head_128_forward.1} parent=0 // pred_check_branch
    %242 = sbr.rel (0) target = $region25
  $region24: #{head_128_forward.1} parent=0 // pred_region
    _
  $region25: #{head_128_forward.1} parent=0 // pred_fallthru
    _
  // Predicated region
  $region26: #{head_128_forward.1} parent=0 // pred_check
    _
  $region27: #{head_128_forward.1} parent=0 // pred_check_branch
    %244 = sbr.rel (0) target = $region29
  $region28: #{head_128_forward.1} parent=0 // pred_region
    _
  $region29: #{head_128_forward.1} parent=0 // pred_fallthru
    _

</llo_original>
